<compile_context>
chip_gen: v6e
topology: v6e:2x2x1
jax: 0.10.0
libtpu: 0.0.40
codegen_flags: <defaults>
</compile_context>

<pallas_src>
import functools

import jax
import jax.numpy as jnp
from jax.experimental import pallas as pl
from jax.experimental.pallas import tpu as pltpu


def _caption_token_logprob_kernel(h_ref, idx_ref, w_ref, out_ref,
                                  m_ref, l_ref, tgt_ref, *, vocab_tile):
    """One (row_tile, vocab_tile) step of the streaming lm-head log-softmax gather.

    h_ref   : (TR, D)  bf16   activations (temperature already folded in)
    idx_ref : (TR, 1)  int32  target token id per row (global vocab index)
    w_ref   : (D, TN)  bf16   lm_head weight tile
    out_ref : (TR, 1)  f32    per-token log-prob (written at the last vocab tile)
    m/l/tgt : (TR, 1)  f32    running max / running sum-exp / target-logit scratch
    """
    v = pl.program_id(1)

    @pl.when(v == 0)
    def _init():
        m_ref[...] = jnp.full_like(m_ref, -jnp.inf)
        l_ref[...] = jnp.zeros_like(l_ref)
        tgt_ref[...] = jnp.zeros_like(tgt_ref)

    # (TR, D) x (D, TN) on the MXU, f32 accumulation.
    logits = jnp.dot(h_ref[...], w_ref[...], preferred_element_type=jnp.float32)

    # Accumulate the target-token logit: only the chunk containing idx contributes.
    local = idx_ref[...] - v * vocab_tile                       # (TR, 1)
    col = jax.lax.broadcasted_iota(jnp.int32, logits.shape, 1)  # (TR, TN)
    tgt_ref[...] += jnp.sum(jnp.where(col == local, logits, 0.0),
                            axis=-1, keepdims=True)

    # Streaming (online) log-sum-exp over the vocab axis.
    m_prev = m_ref[...]
    m_new = jnp.maximum(m_prev, jnp.max(logits, axis=-1, keepdims=True))
    l_ref[...] = (l_ref[...] * jnp.exp(m_prev - m_new)
                  + jnp.sum(jnp.exp(logits - m_new), axis=-1, keepdims=True))
    m_ref[...] = m_new

    @pl.when(v == pl.num_programs(1) - 1)
    def _finalize():
        lse = m_ref[...] + jnp.log(l_ref[...])
        out_ref[...] = tgt_ref[...] - lse


def _largest_aligned_divisor(total, target, align):
    """Largest multiple of `align` that divides `total` and is <= target.
    Falls back to `total` (full-extent block is always legal)."""
    t = (min(target, total) // align) * align
    while t >= align:
        if total % t == 0:
            return t
        t -= align
    return total


def llava_phi_caption_logprobs(hidden, lm_head_w, indices, *,
                               temperature, eos_id,
                               row_tile=128, vocab_tile=2048):
    """Returns (B,) length-normalised caption log-probs.

    hidden    : (B, T, D) bf16  final hidden states at the generated positions
    lm_head_w : (D, V)    bf16  lm_head weight
    indices   : (B, T)    int32 generated token ids

    vocab_tile guidance: ~2048 on v5e/v6e (128 MiB VMEM), ~1024 on v7x (64 MiB VMEM).
    """
    B, T, D = hidden.shape
    V = lm_head_w.shape[-1]

    # Fold the temperature into the activations once (rows x D) instead of
    # scaling every (rows x V) logits chunk inside the kernel.
    inv_t = 1.0 / (temperature if temperature > 0 else 1.0)
    h_flat = (hidden.astype(jnp.float32) * inv_t).astype(hidden.dtype)
    h_flat = h_flat.reshape(B * T, D)
    idx_flat = indices.reshape(B * T, 1).astype(jnp.int32)

    # Row tiling (pad rows to a multiple of 8 sublanes / the row tile).
    R = B * T
    TR = max(8, min(row_tile, ((R + 7) // 8) * 8))
    TR = ((TR + 7) // 8) * 8
    R_pad = ((R + TR - 1) // TR) * TR
    if R_pad != R:
        h_flat = jnp.pad(h_flat, ((0, R_pad - R), (0, 0)))
        idx_flat = jnp.pad(idx_flat, ((0, R_pad - R), (0, 0)))

    # Vocab tiling: lane-dense, multiple of 128 (and of 256 when possible), divides V.
    TN = _largest_aligned_divisor(V, vocab_tile, 128)

    kernel = functools.partial(_caption_token_logprob_kernel, vocab_tile=TN)

    tok_logp = pl.pallas_call(
        kernel,
        out_shape=jax.ShapeDtypeStruct((R_pad, 1), jnp.float32),
        grid_spec=pltpu.PrefetchScalarGridSpec(
            num_scalar_prefetch=0,
            grid=(R_pad // TR, V // TN),
            in_specs=[
                pl.BlockSpec((TR, D), lambda r, v: (r, 0)),   # activations (resident over v)
                pl.BlockSpec((TR, 1), lambda r, v: (r, 0)),   # target token ids
                pl.BlockSpec((D, TN), lambda r, v: (0, v)),   # streamed lm_head weight tile
            ],
            out_specs=pl.BlockSpec((TR, 1), lambda r, v: (r, 0)),
            scratch_shapes=[
                pltpu.VMEM((TR, 1), jnp.float32),   # running max m
                pltpu.VMEM((TR, 1), jnp.float32),   # running sum-exp l
                pltpu.VMEM((TR, 1), jnp.float32),   # target-token logit accumulator
            ],
        ),
        compiler_params=pltpu.CompilerParams(
            dimension_semantics=("parallel", "arbitrary")),
    )(h_flat, idx_flat, lm_head_w)

    tok_logp = tok_logp[:R, 0].reshape(B, T)

    # EOS masking + length-normalised mean on the tiny (B, T) array (hoisted out
    # of the vocab-tiled hot loop).
    extra = jnp.cumsum((indices == eos_id).astype(jnp.int32), axis=1) > 0
    mask = (~extra).astype(jnp.float32)
    msg_len = jnp.maximum(jnp.sum(mask, axis=1), 1.0)   # clamp avoids 0/0 NaN
    return jnp.sum(tok_logp * mask, axis=1) / msg_len


def _reference_logprobs(hidden, lm_head_w, indices, *, temperature, eos_id):
    """Pure-JAX reference mirroring the PyTorch math."""
    logits = jnp.einsum("btd,dv->btv",
                        hidden.astype(jnp.float32),
                        lm_head_w.astype(jnp.float32))
    logits = logits / (temperature if temperature > 0 else 1.0)
    logp = jax.nn.log_softmax(logits, axis=-1)
    tok_logp = jnp.take_along_axis(logp, indices[..., None], axis=-1)[..., 0]
    eos = indices == eos_id
    extra = jnp.cumsum(eos.astype(jnp.int32), axis=1) > 0
    msg_len = indices.shape[1] - jnp.sum(extra, axis=1)
    mask = (~extra).astype(jnp.float32)
    return jnp.sum(tok_logp * mask, axis=1) / msg_len.astype(jnp.float32)


if __name__ == "__main__":
    B, T, D, V = 2, 8, 32, 512        # small TPU-friendly shapes (V multiple of 128)
    temperature = 0.7                 # config['temp']
    eos_id = 2                        # tokenizer.eos_token_id (synthetic)

    key = jax.random.PRNGKey(0)
    k_h, k_w, k_idx = jax.random.split(key, 3)

    # Synthetic final hidden states for the generated-token positions and a
    # synthetic lm_head weight (the model is bf16, matching torch_dtype=bfloat16).
    hidden = (jax.random.normal(k_h, (B, T, D), dtype=jnp.float32) * 0.5
              ).astype(jnp.bfloat16)
    lm_head_w = (jax.random.normal(k_w, (D, V), dtype=jnp.float32) * 0.05
                 ).astype(jnp.bfloat16)

    # Synthetic generated token ids (stand-in for model.generate output);
    # place an EOS mid-sequence in sample 0 to exercise the masking path.
    indices = jax.random.randint(k_idx, (B, T), 3, V, dtype=jnp.int32)
    indices = indices.at[0, 5].set(eos_id)

    # vocab_tile=128 so the demo exercises the multi-tile streaming LSE path
    # (grid = (1, 4)); use ~2048 (v5e/v6e) or ~1024 (v7x) at real Phi sizes.
    log_probs = llava_phi_caption_logprobs(
        hidden, lm_head_w, indices,
        temperature=temperature, eos_id=eos_id, vocab_tile=128)
    log_probs = jax.block_until_ready(log_probs)

    ref = _reference_logprobs(
        hidden, lm_head_w, indices, temperature=temperature, eos_id=eos_id)
    assert jnp.allclose(log_probs, ref, rtol=1e-2, atol=1e-2), (log_probs, ref)

    print("KERNEL_OK")
</pallas_src>

<mosaic_0001>
module attributes {stable_mosaic.version = 11 : i64} {
  func.func @_caption_token_logprob_kernel(%arg0: i32, %arg1: i32, %arg2: memref<16x32xbf16, #tpu.memory_space<vmem>>, %arg3: memref<16x1xi32, #tpu.memory_space<vmem>>, %arg4: memref<32x128xbf16, #tpu.memory_space<vmem>>, %arg5: memref<16x1xf32, #tpu.memory_space<vmem>>, %arg6: memref<16x1xf32, #tpu.memory_space<vmem>>, %arg7: memref<16x1xf32, #tpu.memory_space<vmem>>, %arg8: memref<16x1xf32, #tpu.memory_space<vmem>>) attributes {dimension_semantics = [#tpu.dimension_semantics<parallel>, #tpu.dimension_semantics<arbitrary>], iteration_bounds = array<i64: 1, 4>, scalar_prefetch = 0 : i64, scratch_operands = 3 : i64, tpu.core_type = #tpu.core_type<tc>, window_params = [{transform_indices = @transform_0, window_bounds = array<i64: 16, 32>}, {transform_indices = @transform_1, window_bounds = array<i64: 16, 1>}, {transform_indices = @transform_2, window_bounds = array<i64: 32, 128>}, {transform_indices = @transform_3, window_bounds = array<i64: 16, 1>}]} {
    %c0_i32 = arith.constant 0 : i32
    %0 = arith.cmpi eq, %arg1, %c0_i32 : i32
    %1 = arith.extui %0 : i1 to i32
    %c0_i32_0 = arith.constant 0 : i32
    %2 = arith.cmpi ne, %1, %c0_i32_0 : i32
    scf.if %2 {
      %cst_23 = arith.constant 0xFF800000 : f32
      %39 = vector.broadcast %cst_23 : f32 to vector<16x1xf32>
      %c0_24 = arith.constant 0 : index
      %c0_25 = arith.constant 0 : index
      %40 = vector.load %arg6[%c0_24, %c0_25] : memref<16x1xf32, #tpu.memory_space<vmem>>, vector<16x1xf32>
      tpu.vector_store %arg6[%c0_24, %c0_25], %39 {strides = array<i32>} : memref<16x1xf32, #tpu.memory_space<vmem>>, vector<16x1xf32>,
      %cst_26 = arith.constant 0.000000e+00 : f32
      %41 = vector.broadcast %cst_26 : f32 to vector<16x1xf32>
      %c0_27 = arith.constant 0 : index
      %c0_28 = arith.constant 0 : index
      %42 = vector.load %arg7[%c0_27, %c0_28] : memref<16x1xf32, #tpu.memory_space<vmem>>, vector<16x1xf32>
      tpu.vector_store %arg7[%c0_27, %c0_28], %41 {strides = array<i32>} : memref<16x1xf32, #tpu.memory_space<vmem>>, vector<16x1xf32>,
      %cst_29 = arith.constant 0.000000e+00 : f32
      %43 = vector.broadcast %cst_29 : f32 to vector<16x1xf32>
      %c0_30 = arith.constant 0 : index
      %c0_31 = arith.constant 0 : index
      %44 = vector.load %arg8[%c0_30, %c0_31] : memref<16x1xf32, #tpu.memory_space<vmem>>, vector<16x1xf32>
      tpu.vector_store %arg8[%c0_30, %c0_31], %43 {strides = array<i32>} : memref<16x1xf32, #tpu.memory_space<vmem>>, vector<16x1xf32>,
    } else {
    }
    %c0 = arith.constant 0 : index
    %c0_1 = arith.constant 0 : index
    %3 = vector.load %arg2[%c0, %c0_1] : memref<16x32xbf16, #tpu.memory_space<vmem>>, vector<16x32xbf16>
    %c0_2 = arith.constant 0 : index
    %c0_3 = arith.constant 0 : index
    %4 = vector.load %arg4[%c0_2, %c0_3] : memref<32x128xbf16, #tpu.memory_space<vmem>>, vector<32x128xbf16>
    %cst = arith.constant dense<0.000000e+00> : vector<16x128xf32>
    %5 = tpu.matmul %3, %4, %cst {dimension_numbers = #tpu.dot_dimension_numbers<[1], [0], [0], [1], [0, 0, 1, 1], [], []>} : vector<16x32xbf16>, vector<32x128xbf16>, vector<16x128xf32> -> vector<16x128xf32>
    %c0_4 = arith.constant 0 : index
    %c0_5 = arith.constant 0 : index
    %6 = vector.load %arg3[%c0_4, %c0_5] : memref<16x1xi32, #tpu.memory_space<vmem>>, vector<16x1xi32>
    %c128_i32 = arith.constant 128 : i32
    %7 = arith.muli %arg1, %c128_i32 : i32
    %8 = vector.broadcast %7 : i32 to vector<16x1xi32>
    %9 = arith.subi %6, %8 : vector<16x1xi32>
    %10 = tpu.iota {dimensions = array<i32: 1>} : vector<16x128xi32>
    %c0_6 = arith.constant 0 : index
    %c0_7 = arith.constant 0 : index
    %11 = vector.load %arg8[%c0_6, %c0_7] : memref<16x1xf32, #tpu.memory_space<vmem>>, vector<16x1xf32>
    %12 = vector.broadcast %9 : vector<16x1xi32> to vector<16x128xi32>
    %13 = arith.cmpi eq, %10, %12 : vector<16x128xi32>
    %cst_8 = arith.constant 0.000000e+00 : f32
    %14 = vector.broadcast %cst_8 : f32 to vector<16x128xf32>
    %15 = arith.select %13, %5, %14 : vector<16x128xi1>, vector<16x128xf32>
    %cst_9 = arith.constant dense<0.000000e+00> : vector<16xf32>
    %16 = vector.multi_reduction <add>, %15, %cst_9 [1] : vector<16x128xf32> to vector<16xf32>
    %17 = vector.shape_cast %16 : vector<16xf32> to vector<16x1xf32>
    %18 = arith.addf %11, %17 : vector<16x1xf32>
    %c0_10 = arith.constant 0 : index
    %c0_11 = arith.constant 0 : index
    %19 = vector.load %arg8[%c0_10, %c0_11] : memref<16x1xf32, #tpu.memory_space<vmem>>, vector<16x1xf32>
    tpu.vector_store %arg8[%c0_10, %c0_11], %18 {strides = array<i32>} : memref<16x1xf32, #tpu.memory_space<vmem>>, vector<16x1xf32>,
    %c0_12 = arith.constant 0 : index
    %c0_13 = arith.constant 0 : index
    %20 = vector.load %arg6[%c0_12, %c0_13] : memref<16x1xf32, #tpu.memory_space<vmem>>, vector<16x1xf32>
    %cst_14 = arith.constant dense<0xFF800000> : vector<16xf32>
    %21 = vector.multi_reduction <maximumf>, %5, %cst_14 [1] : vector<16x128xf32> to vector<16xf32>
    %22 = vector.shape_cast %21 : vector<16xf32> to vector<16x1xf32>
    %23 = arith.maximumf %20, %22 : vector<16x1xf32>
    %c0_15 = arith.constant 0 : index
    %c0_16 = arith.constant 0 : index
    %24 = vector.load %arg7[%c0_15, %c0_16] : memref<16x1xf32, #tpu.memory_space<vmem>>, vector<16x1xf32>
    %25 = arith.subf %20, %23 : vector<16x1xf32>
    %26 = math.exp %25 : vector<16x1xf32>
    %27 = arith.mulf %24, %26 : vector<16x1xf32>
    %28 = vector.broadcast %23 : vector<16x1xf32> to vector<16x128xf32>
    %29 = arith.subf %5, %28 : vector<16x128xf32>
    %30 = math.exp %29 : vector<16x128xf32>
    %cst_17 = arith.constant dense<0.000000e+00> : vector<16xf32>
    %31 = vector.multi_reduction <add>, %30, %cst_17 [1] : vector<16x128xf32> to vector<16xf32>
    %32 = vector.shape_cast %31 : vector<16xf32> to vector<16x1xf32>
    %33 = arith.addf %27, %32 : vector<16x1xf32>
    %c0_18 = arith.constant 0 : index
    %c0_19 = arith.constant 0 : index
    %34 = vector.load %arg7[%c0_18, %c0_19] : memref<16x1xf32, #tpu.memory_space<vmem>>, vector<16x1xf32>
    tpu.vector_store %arg7[%c0_18, %c0_19], %33 {strides = array<i32>} : memref<16x1xf32, #tpu.memory_space<vmem>>, vector<16x1xf32>,
    %c0_20 = arith.constant 0 : index
    %c0_21 = arith.constant 0 : index
    %35 = vector.load %arg6[%c0_20, %c0_21] : memref<16x1xf32, #tpu.memory_space<vmem>>, vector<16x1xf32>
    tpu.vector_store %arg6[%c0_20, %c0_21], %23 {strides = array<i32>} : memref<16x1xf32, #tpu.memory_space<vmem>>, vector<16x1xf32>,
    %c3_i32 = arith.constant 3 : i32
    %36 = arith.cmpi eq, %arg1, %c3_i32 : i32
    %37 = arith.extui %36 : i1 to i32
    %c0_i32_22 = arith.constant 0 : i32
    %38 = arith.cmpi ne, %37, %c0_i32_22 : i32
    scf.if %38 {
      %c0_23 = arith.constant 0 : index
      %c0_24 = arith.constant 0 : index
      %39 = vector.load %arg6[%c0_23, %c0_24] : memref<16x1xf32, #tpu.memory_space<vmem>>, vector<16x1xf32>
      %c0_25 = arith.constant 0 : index
      %c0_26 = arith.constant 0 : index
      %40 = vector.load %arg7[%c0_25, %c0_26] : memref<16x1xf32, #tpu.memory_space<vmem>>, vector<16x1xf32>
      %41 = math.log %40 : vector<16x1xf32>
      %42 = arith.addf %39, %41 : vector<16x1xf32>
      %c0_27 = arith.constant 0 : index
      %c0_28 = arith.constant 0 : index
      %43 = vector.load %arg8[%c0_27, %c0_28] : memref<16x1xf32, #tpu.memory_space<vmem>>, vector<16x1xf32>
      %44 = arith.subf %43, %42 : vector<16x1xf32>
      %c0_29 = arith.constant 0 : index
      %c0_30 = arith.constant 0 : index
      %45 = vector.load %arg5[%c0_29, %c0_30] : memref<16x1xf32, #tpu.memory_space<vmem>>, vector<16x1xf32>
      tpu.vector_store %arg5[%c0_29, %c0_30], %44 {strides = array<i32>} : memref<16x1xf32, #tpu.memory_space<vmem>>, vector<16x1xf32>,
    } else {
    }
    return
  }
  func.func @transform_0(%arg0: i32, %arg1: i32) -> (i32, i32) {
    %c0_i32 = arith.constant 0 : i32
    %c0_i32_0 = arith.constant 0 : i32
    return %arg0, %c0_i32 : i32, i32
  }
  func.func @transform_1(%arg0: i32, %arg1: i32) -> (i32, i32) {
    %c0_i32 = arith.constant 0 : i32
    %c0_i32_0 = arith.constant 0 : i32
    return %arg0, %c0_i32 : i32, i32
  }
  func.func @transform_2(%arg0: i32, %arg1: i32) -> (i32, i32) {
    %c0_i32 = arith.constant 0 : i32
    %c0_i32_0 = arith.constant 0 : i32
    return %c0_i32, %arg1 : i32, i32
  }
  func.func @transform_3(%arg0: i32, %arg1: i32) -> (i32, i32) {
    %c0_i32 = arith.constant 0 : i32
    %c0_i32_0 = arith.constant 0 : i32
    return %arg0, %c0_i32 : i32, i32
  }
}

</mosaic_0001>

<llo_original>
// kernel: tpu_custom_call.1
$region0: #{tpu_custom_call.1}
  #allocation0 [shape = 'u32[]', space=smem, size = 0x4, offset = 0x4, fixed_abs, tag = 'smem constant byte address 0x4 - core index']
  #allocation1 [shape = 'u32[144,128]{1,0:T(1,128)}', space=vmem, size = 0x12000, scoped, tag = 'internal scratch']
  #allocation2 [shape = 'f32[16,1]{1,0:T(8,128)}', space=vmem, size = 0x2000, scoped, tag = 'scratch operand']
  #allocation3 [shape = 'f32[16,1]{1,0:T(8,128)}', space=vmem, size = 0x2000, scoped, tag = 'scratch operand']
  #allocation4 [shape = 'f32[16,1]{1,0:T(8,128)}', space=vmem, size = 0x2000, scoped, tag = 'scratch operand']
  %s0 = inlined_call_operand.vmem [shape: bf16[16,32], index: 0, kind: input, shape index: {}]
  %s1 = inlined_call_operand.vmem [shape: s32[16,1], index: 1, kind: input, shape index: {}]
  %s2 = inlined_call_operand.hbm [shape: bf16[32,512], index: 2, kind: input, shape index: {}]
  %s3 = inlined_call_operand.vmem [shape: f32[16,1], index: 3, kind: output, shape index: {}]
  %s4 = sld [smem:[#allocation0]]
  $region57: #{tpu_custom_call.1} parent=0
    _
  %s6 = ssub.s32 1, %s4
  %s7 = scalar_select 0, %s6, %s4
  $region1: #{tpu_custom_call.1} parent=0
    #allocation5 [shape = 'u8[16384]{0}', space=vmem, size = 0x4000, scoped, tag = 'input window, operand 2']
    #allocation6 [shape = 's32[2]{0}', space=sflag, size = 0x8, scoped, tag = 'scoped memory for tpu_custom_call.1']
    %8 = vsyncpa [#allocation6], 0
    %s9 = scalar_lea.sflag [#allocation6], 1
    %10 = vsyncpa %s9, 0
    loop: start=0, step=1, limit=6
    $region2: #{tpu_custom_call.1} parent=1 // loop_pre_header
      _
    $region3: #{tpu_custom_call.1} parent=1 // loop_header
      %s12 = sphi 0, %s16
      %p13 = scmp.ge.s32.totalorder %s12, 6
      %s19 = sphi 0, %s31
      %s20 = sphi 0, %s27
      %s21 = sphi 0, %s19
      %s22 = sphi 0, %s20
      %s23 = sphi 0, %s21
      %s24 = sphi 0, %s22
      %s34 = sphi 0, %s36
      %s37 = sphi 0, %s34
      %s38 = sphi 0, %s37
      %s54 = sphi 0, %s38
      %s60 = sphi 0, %s62
      %s63 = sphi 0, %s60
      %s64 = sphi 0, %s63
      %s80 = sphi 0, %s64
      %s86 = sphi 0, %s88
      %s89 = sphi 0, %s86
      %s90 = sphi 0, %s89
      %s106 = sphi 0, %s90
      %s112 = sphi 0, %s114
      %s115 = sphi 0, %s112
      %s116 = sphi 0, %s115
      %s132 = sphi 0, %s116
    $region4: #{tpu_custom_call.1} parent=1 // loop_header_branch
      %15 = sbr.rel (%p13) target = $region8
    $region5: #{tpu_custom_call.1} parent=1 // loop_body
      %s17 = ssub.s32 %s12, 1
      %s18 = ssub.s32 %s12, 2
      %s25 = sadd.s32 1, %s20
      %p26 = scmp.ge.s32.totalorder %s25, 4
      %s27 = scalar_select %p26, 0, %s25
      %s28 = sadd.s32 1, %s19
      %s29 = scalar_select %p26, %s28, %s19
      %p30 = scmp.ge.s32.totalorder %s29, 1
      %s31 = scalar_select %p30, 0, %s29
      %s32 = ssub.s32 %s19, %s31
      %p33 = scmp.eq.s32.totalorder %s32, 0
      %s35 = sadd.s32 %s34, 1
      %s36 = scalar_select %p33, %s34, %s35
      %p39 = pneg %p33
      %p40 = scmp.eq.s32.totalorder %s12, 3
      %p41 = por %p39, %p40
      %p42 = scmp.ne.s32.totalorder %s34, %s37
      %p43 = scmp.eq.s32.totalorder %s12, 0
      %p44 = por %p42, %p43
      %p45 = scmp.ne.s32.totalorder %s34, %s37
      %p46 = scmp.eq.s32.totalorder %s17, 3
      %p47 = por %p45, %p46
      %p48 = scmp.ne.s32.totalorder %s37, %s38
      %p49 = scmp.eq.s32.totalorder %s17, 0
      %p50 = por %p48, %p49
      %p51 = scmp.ne.s32.totalorder %s37, %s38
      %p52 = scmp.eq.s32.totalorder %s18, 3
      %p53 = por %p51, %p52
      %p55 = scmp.ne.s32.totalorder %s38, %s54
      %p56 = scmp.eq.s32.totalorder %s18, 0
      %p57 = por %p55, %p56
      %s58 = ssub.s32 %s19, %s31
      %p59 = scmp.eq.s32.totalorder %s58, 0
      %s61 = sadd.s32 %s60, 1
      %s62 = scalar_select %p59, %s60, %s61
      %p65 = pneg %p59
      %p66 = scmp.eq.s32.totalorder %s12, 3
      %p67 = por %p65, %p66
      %p68 = scmp.ne.s32.totalorder %s60, %s63
      %p69 = scmp.eq.s32.totalorder %s12, 0
      %p70 = por %p68, %p69
      %p71 = scmp.ne.s32.totalorder %s60, %s63
      %p72 = scmp.eq.s32.totalorder %s17, 3
      %p73 = por %p71, %p72
      %p74 = scmp.ne.s32.totalorder %s63, %s64
      %p75 = scmp.eq.s32.totalorder %s17, 0
      %p76 = por %p74, %p75
      %p77 = scmp.ne.s32.totalorder %s63, %s64
      %p78 = scmp.eq.s32.totalorder %s18, 3
      %p79 = por %p77, %p78
      %p81 = scmp.ne.s32.totalorder %s64, %s80
      %p82 = scmp.eq.s32.totalorder %s18, 0
      %p83 = por %p81, %p82
      %s84 = ssub.s32 %s20, %s27
      %p85 = scmp.eq.s32.totalorder %s84, 0
      %s87 = sadd.s32 %s86, 1
      %s88 = scalar_select %p85, %s86, %s87
      %p91 = pneg %p85
      %p92 = scmp.eq.s32.totalorder %s12, 3
      %p93 = por %p91, %p92
      %p94 = scmp.ne.s32.totalorder %s86, %s89
      %p95 = scmp.eq.s32.totalorder %s12, 0
      %p96 = por %p94, %p95
      %p97 = scmp.ne.s32.totalorder %s86, %s89
      %p98 = scmp.eq.s32.totalorder %s17, 3
      %p99 = por %p97, %p98
      %p100 = scmp.ne.s32.totalorder %s89, %s90
      %p101 = scmp.eq.s32.totalorder %s17, 0
      %p102 = por %p100, %p101
      %p103 = scmp.ne.s32.totalorder %s89, %s90
      %p104 = scmp.eq.s32.totalorder %s18, 3
      %p105 = por %p103, %p104
      %p107 = scmp.ne.s32.totalorder %s90, %s106
      %p108 = scmp.eq.s32.totalorder %s18, 0
      %p109 = por %p107, %p108
      %s110 = ssub.s32 %s19, %s31
      %p111 = scmp.eq.s32.totalorder %s110, 0
      %s113 = sadd.s32 %s112, 1
      %s114 = scalar_select %p111, %s112, %s113
      %p117 = pneg %p111
      %p118 = scmp.eq.s32.totalorder %s12, 3
      %p119 = por %p117, %p118
      %p120 = scmp.ne.s32.totalorder %s112, %s115
      %p121 = scmp.eq.s32.totalorder %s12, 0
      %p122 = por %p120, %p121
      %p123 = scmp.ne.s32.totalorder %s112, %s115
      %p124 = scmp.eq.s32.totalorder %s17, 3
      %p125 = por %p123, %p124
      %p126 = scmp.ne.s32.totalorder %s115, %s116
      %p127 = scmp.eq.s32.totalorder %s17, 0
      %p128 = por %p126, %p127
      %p129 = scmp.ne.s32.totalorder %s115, %s116
      %p130 = scmp.eq.s32.totalorder %s18, 3
      %p131 = por %p129, %p130
      %p133 = scmp.ne.s32.totalorder %s116, %s132
      %p134 = scmp.eq.s32.totalorder %s18, 0
      %p135 = por %p133, %p134
      %p136 = scmp.le.s32.totalorder 1, %s12
      %p137 = scmp.lt.s32.totalorder %s12, 5
      %p138 = pnand %p136, %p137
      %p139 = pneg %p138
      // Predicated region
      $region9: #{tpu_custom_call.1} parent=5 // pred_check
        _
      $region10: #{tpu_custom_call.1} parent=5 // pred_check_branch
        %141 = sbr.rel (%p138) target = $region12
      $region11: #{tpu_custom_call.1} parent=5 // pred_region
        %s142 = ssub.s32 %s12, 1
        // Predicated region
        $region13: #{tpu_custom_call.1} parent=11 // pred_check
          %p143 = pneg %p50
        $region14: #{tpu_custom_call.1} parent=11 // pred_check_branch
          %145 = sbr.rel (%p143) target = $region16
        $region15: #{tpu_custom_call.1} parent=11 // pred_region
          %s146 = smul.u32 2, %s21
          %p147 = scmp.lt.s32.totalorder %s146, 1
          %s148 = scalar_select %p147, %s146, 1
          %s149 = smul.addr %s148, 4
          %s150 = scalar_lea.vmem %s0, %s149
          %s151 = smul.u32 2, %s21
        $region16: #{tpu_custom_call.1} parent=11 // pred_fallthru
          _
        // Predicated region
        $region17: #{tpu_custom_call.1} parent=11 // pred_check
          %p152 = pneg %p76
        $region18: #{tpu_custom_call.1} parent=11 // pred_check_branch
          %154 = sbr.rel (%p152) target = $region20
        $region19: #{tpu_custom_call.1} parent=11 // pred_region
          %s155 = smul.u32 2, %s21
          %p156 = scmp.lt.s32.totalorder %s155, 1
          %s157 = scalar_select %p156, %s155, 1
          %s158 = smul.addr %s157, 8
          %s159 = scalar_lea.vmem %s1, %s158
          %s160 = smul.u32 2, %s21
        $region20: #{tpu_custom_call.1} parent=11 // pred_fallthru
          _
      $region12: #{tpu_custom_call.1} parent=5 // pred_fallthru
        _
      %p161 = scmp.lt.s32.totalorder %s12, 4
      // Predicated region
      $region21: #{tpu_custom_call.1} parent=5 // pred_check
        %p162 = pneg %p161
      $region22: #{tpu_custom_call.1} parent=5 // pred_check_branch
        %164 = sbr.rel (%p162) target = $region24
      $region23: #{tpu_custom_call.1} parent=5 // pred_region
        // Predicated region
        $region25: #{tpu_custom_call.1} parent=23 // pred_check
          %p165 = pneg %p96
        $region26: #{tpu_custom_call.1} parent=23 // pred_check_branch
          %167 = sbr.rel (%p165) target = $region28
        $region27: #{tpu_custom_call.1} parent=23 // pred_region
          %s168 = sand.u32 %s86, 1
          %s169 = scalar_lea.sflag [#allocation6], %s168
          %s170 = sand.u32 %s86, 1
          %s171 = smul.addr %s170, 16
          %s172 = scalar_lea.vmem [#allocation5], %s171
          %s174 = ssub.s32 256, 256
          %175 = vsyncadd %s169, %s174
          %s176 = smul.addr %s20, 64
          %s177 = scalar_lea.hbm %s2, %s176
          %s178 = sshll.u32 %s172, 4
          %s179 = int_to_ptr.vmem [resolvable:$true] %s178
          %184 = dma.hbm_to_vmem [thread:$0]  %s177, 256, %s179, %s169, 256, 64, 4
        $region28: #{tpu_custom_call.1} parent=23 // pred_fallthru
          _
      $region24: #{tpu_custom_call.1} parent=5 // pred_fallthru
        _
      %p185 = scmp.le.s32.totalorder 1, %s12
      %p186 = scmp.lt.s32.totalorder %s12, 5
      %p187 = pnand %p185, %p186
      %p188 = pneg %p187
      // Predicated region
      $region29: #{tpu_custom_call.1} parent=5 // pred_check
        _
      $region30: #{tpu_custom_call.1} parent=5 // pred_check_branch
        %190 = sbr.rel (%p187) target = $region32
      $region31: #{tpu_custom_call.1} parent=5 // pred_region
        %s191 = ssub.s32 %s12, 1
        %s192 = sand.u32 %s89, 1
        %s193 = scalar_lea.sflag [#allocation6], %s192
        %s194 = sand.u32 %s89, 1
        %s195 = smul.addr %s194, 16
        %s196 = scalar_lea.vmem [#allocation5], %s195
        // Predicated region
        $region33: #{tpu_custom_call.1} parent=31 // pred_check
          %p197 = pneg %p102
        $region34: #{tpu_custom_call.1} parent=31 // pred_check_branch
          %199 = sbr.rel (%p197) target = $region36
        $region35: #{tpu_custom_call.1} parent=31 // pred_region
          %200 = dma.done %s193, 256
        $region36: #{tpu_custom_call.1} parent=31 // pred_fallthru
          _
        %s201 = smul.u32 2, %s21
        %p202 = scmp.lt.s32.totalorder %s201, 1
        %s203 = scalar_select %p202, %s201, 1
        %s204 = smul.addr %s203, 4
        %s205 = scalar_lea.vmem %s0, %s204
        %p206 = pneg %p50
        %p207 = pneg %p47
        %s208 = smul.u32 2, %s21
        %p209 = scmp.lt.s32.totalorder %s208, 1
        %s210 = scalar_select %p209, %s208, 1
        %s211 = smul.addr %s210, 8
        %s212 = scalar_lea.vmem %s1, %s211
        %p213 = pneg %p76
        %p214 = pneg %p73
        %s215 = sand.u32 %s89, 1
        %s216 = scalar_lea.sflag [#allocation6], %s215
        %s217 = sand.u32 %s89, 1
        %s218 = smul.addr %s217, 16
        %s219 = scalar_lea.vmem [#allocation5], %s218
        %p220 = pneg %p102
        %p221 = pneg %p99
        %p222 = pneg %p128
        %p223 = pneg %p125
        %s224 = smul.u32 2, %s21
        %p225 = scmp.lt.s32.totalorder %s224, 1
        %s226 = scalar_select %p225, %s224, 1
        %s227 = smul.addr %s226, 8
        %s228 = scalar_lea.vmem %s3, %s227
        %s229 = smul.u32 2, %s21
        %p230 = scmp.lt.s32.totalorder %s229, 1
        %s231 = scalar_select %p230, %s229, 1
        %s232 = smul.addr %s231, 4
        %s233 = scalar_lea.vmem %s0, %s232
        %s234 = smul.u32 2, %s21
        %s235 = smul.u32 2, %s21
        %p236 = scmp.lt.s32.totalorder %s235, 1
        %s237 = scalar_select %p236, %s235, 1
        %s238 = smul.addr %s237, 8
        %s239 = scalar_lea.vmem %s1, %s238
        %s240 = smul.u32 2, %s21
        %s241 = smul.u32 2, %s21
        %p242 = scmp.lt.s32.totalorder %s241, 1
        %s243 = scalar_select %p242, %s241, 1
        %s244 = smul.addr %s243, 8
        %s245 = scalar_lea.vmem %s3, %s244
        %s246 = smul.u32 2, %s21
        %p248 = scmp.eq.s32.totalorder %s22, 0
        // Predicated region
        $region37: #{tpu_custom_call.1} parent=31 // pred_check
          %p249 = pneg %p248
        $region38: #{tpu_custom_call.1} parent=31 // pred_check_branch
          %251 = sbr.rel (%p249) target = $region40
        $region39: #{tpu_custom_call.1} parent=31 // pred_region
          %vm252 = vcmask 7168
          %253 = vst.msk [vmem:[#allocation2] sm:$0xff] %vm252, -inf
          %254 = vst.msk [vmem:[#allocation2 + $0x8] sm:$0xff] %vm252, -inf
          %255 = vst.msk [vmem:[#allocation3] sm:$0xff] %vm252, 0.0
          %256 = vst.msk [vmem:[#allocation3 + $0x8] sm:$0xff] %vm252, 0.0
          %257 = vst.msk [vmem:[#allocation4] sm:$0xff] %vm252, 0.0
          %258 = vst.msk [vmem:[#allocation4 + $0x8] sm:$0xff] %vm252, 0.0
        $region40: #{tpu_custom_call.1} parent=31 // pred_fallthru
          _
        %v259 = vld [vmem:[%s233] sm:$0xf]
        %v260 = vld [vmem:[%s233 + $0x4] sm:$0xf]
        %v261 = vld [vmem:[%s196] sm:$0xf]
        %v262 = vld [vmem:[%s196 + $0x4] sm:$0xf]
        %v263 = vld [vmem:[%s196 + $0x8] sm:$0xf]
        %v264 = vld [vmem:[%s196 + $0xc] sm:$0xf]
        %v267 = vunpack.c.l.b16 %v259
        %v268 = vunpack.c.l.b16 %v260
        %v269 = vpack.c.b16 %v268, %v267
        %v274 = vunpack.c.l.b16 %v261
        %v275 = vunpack.c.l.b16 %v262
        %v276 = vunpack.c.l.b16 %v263
        %v277 = vunpack.c.l.b16 %v264
        %v278 = vpack.c.b16 %v275, %v274
        %v279 = vpack.c.b16 %v277, %v276
        %vm282 = vcmask 261120
        %v284 = vsel %vm282, %v269, 0
        %286 = vmatprep.subr.bf16.mxu0 0
        %287 = vmatpush1.bf16.msra.mxu0 0
        %288 = vmatprep.subr.bf16.mxu0 0
        %289 = vmatpush1.bf16.msra.mxu0 0
        %290 = vmatprep.subr.bf16.mxu0 0
        %291 = vmatpush1.bf16.msra.mxu0 0
        %292 = vmatprep.subr.bf16.mxu0 0
        %293 = vmatpush1.bf16.msra.mxu0 0
        %294 = vmatprep.subr.bf16.mxu0 0
        %295 = vmatpush1.bf16.msra.mxu0 0
        %296 = vmatprep.subr.bf16.mxu0 0
        %297 = vmatpush1.bf16.msra.mxu0 0
        %298 = vmatprep.subr.bf16.mxu0 0
        %299 = vmatpush1.bf16.msra.mxu0 %v279
        %300 = vmatprep.subr.bf16.mxu0 0
        %301 = vmatpush1.bf16.msra.mxu0 %v278
        %302 = vmatprep.subr.bf16.mxu0 0
        %303 = vmatpush2.bf16.msra.mxu0 0
        %304 = vmatprep.subr.bf16.mxu0 0
        %305 = vmatpush2.bf16.msra.mxu0 0
        %306 = vmatprep.subr.bf16.mxu0 0
        %307 = vmatpush2.bf16.msra.mxu0 0
        %308 = vmatprep.subr.bf16.mxu0 0
        %309 = vmatpush2.bf16.msra.mxu0 0
        %310 = vmatprep.subr.bf16.mxu0 0
        %311 = vmatpush2.bf16.msra.mxu0 0
        %312 = vmatprep.subr.bf16.mxu0 0
        %313 = vmatpush2.bf16.msra.mxu0 0
        %314 = vmatprep.subr.bf16.mxu0 0
        %315 = vmatpush2.bf16.msra.mxu0 0
        %316 = vmatprep.subr.bf16.mxu0 0
        %317 = vmatpush2.bf16.msra.mxu0 0
        %318 = vmatprep.mubr.bf16.mxu0 0
        %319 = vmatmul.mubr.bf16.gmra.mxu0 %v284
        %v320 = vpop.f32.mrf.mxu0
        %v321 = vadd.f32 0.0, %v320
        %v322 = vpop.f32.mrf.mxu0
        %v323 = vpop.f32.mrf.mxu0
        %v324 = vadd.f32 0.0, %v323
        %v325 = vpop.f32.mrf.mxu0
        %326 = vdwg.mxu0
        %v327 = vld [vmem:[%s239] sm:$0xff]
        %v328 = vld [vmem:[%s239 + $0x8] sm:$0xff]
        %s329 = smul.u32 %s22, 128
        %v330 = vstv %s329
        %v331 = vsub.s32 %v327, %v330
        %v332 = vsub.s32 %v328, %v330
        %v333 = vlaneseq
        %v334 = vand.u32 %v333, 127
        %v335 = vld [vmem:[#allocation4] sm:$0xff]
        %v336 = vld [vmem:[#allocation4 + $0x8] sm:$0xff]
        %337 = vset.pattern.permute.xlu0 0
        %338 = vperm.xlu0 %337, %v331
        %v339 = vpop.permute.xlu0 %338
        %340 = vset.pattern.permute.xlu0 0
        %341 = vperm.xlu0 %340, %v332
        %v342 = vpop.permute.xlu0 %341
        %vm343 = vcmp.eq.s32.totalorder %v334, %v339
        %vm344 = vcmp.eq.s32.totalorder %v334, %v342
        %v345 = vsel %vm343, %v321, 0.0
        %v346 = vsel %vm344, %v324, 0.0
        %347 = vadd.xlane.f32.xlu0 %v345
        %v348 = vpop.xlane.xlu0 %347
        %349 = vadd.xlane.f32.xlu0 %v346
        %v350 = vpop.xlane.xlu0 %349
        %v351 = vadd.f32 %v335, %v348
        %v352 = vadd.f32 %v336, %v350
        %vm353 = vcmask 7168
        %354 = vst.msk [vmem:[#allocation4] sm:$0xff] %vm353, %v351
        %355 = vst.msk [vmem:[#allocation4 + $0x8] sm:$0xff] %vm353, %v352
        %v356 = vld [vmem:[#allocation2] sm:$0xff]
        %v357 = vld [vmem:[#allocation2 + $0x8] sm:$0xff]
        %358 = vmax.xlane.f32.xlu0 %v321
        %v359 = vpop.xlane.xlu0 %358
        %360 = vmax.xlane.f32.xlu0 %v324
        %v361 = vpop.xlane.xlu0 %360
        %v362 = vmax.f32 %v356, %v359
        %v363 = vmax.f32 %v357, %v361
        %v364 = vld [vmem:[#allocation3] sm:$0xff]
        %v365 = vld [vmem:[#allocation3 + $0x8] sm:$0xff]
        %v366 = vsub.f32 %v356, %v362
        %v367 = vsub.f32 %v357, %v363
        %v368 = vmul.f32 %v366, 1.442695
        %v369 = vpow.pop %v368
        %v370 = vmul.f32 %v367, 1.442695
        %v371 = vpow.pop %v370
        %v372 = vmul.f32 %v364, %v369
        %v373 = vmul.f32 %v365, %v371
        %375 = vset.pattern.permute.xlu0 0
        %376 = vperm.xlu0 %375, %v362
        %v377 = vpop.permute.xlu0 %376
        %380 = vset.pattern.permute.xlu0 0
        %381 = vperm.xlu0 %380, %v363
        %v382 = vpop.permute.xlu0 %381
        %v384 = vsub.f32 %v321, %v377
        %v385 = vsub.f32 %v324, %v382
        %v386 = vmul.f32 %v384, 1.442695
        %v387 = vpow.pop %v386
        %v388 = vmul.f32 %v385, 1.442695
        %v389 = vpow.pop %v388
        %390 = vadd.xlane.f32.xlu0 %v387
        %v391 = vpop.xlane.xlu0 %390
        %392 = vadd.xlane.f32.xlu0 %v389
        %v393 = vpop.xlane.xlu0 %392
        %v394 = vadd.f32 %v372, %v391
        %v395 = vadd.f32 %v373, %v393
        %396 = vst.msk [vmem:[#allocation3] sm:$0xff] %vm353, %v394
        %397 = vst.msk [vmem:[#allocation3 + $0x8] sm:$0xff] %vm353, %v395
        %398 = vst.msk [vmem:[#allocation2] sm:$0xff] %vm353, %v362
        %399 = vst.msk [vmem:[#allocation2 + $0x8] sm:$0xff] %vm353, %v363
        %p400 = scmp.eq.s32.totalorder %s22, 3
        // Predicated region
        $region41: #{tpu_custom_call.1} parent=31 // pred_check
          %p401 = pneg %p400
        $region42: #{tpu_custom_call.1} parent=31 // pred_check_branch
          %403 = sbr.rel (%p401) target = $region44
        $region43: #{tpu_custom_call.1} parent=31 // pred_region
          %v404 = vld [vmem:[#allocation2] sm:$0xff]
          %v405 = vld [vmem:[#allocation2 + $0x8] sm:$0xff]
          %v406 = vld [vmem:[#allocation3] sm:$0xff]
          %v407 = vld [vmem:[#allocation3 + $0x8] sm:$0xff]
          %v408 = vlog2.pop %v406
          %v409 = vmul.f32 %v408, 0.6931472
          %v410 = vlog2.pop %v407
          %v411 = vmul.f32 %v410, 0.6931472
          %v412 = vadd.f32 %v404, %v409
          %v413 = vadd.f32 %v405, %v411
          %v414 = vld [vmem:[#allocation4] sm:$0xff]
          %v415 = vld [vmem:[#allocation4 + $0x8] sm:$0xff]
          %v416 = vsub.f32 %v414, %v412
          %v417 = vsub.f32 %v415, %v413
          %418 = vst.msk [vmem:[%s245] sm:$0xff] %vm353, %v416
          %419 = vst.msk [vmem:[%s245 + $0x8] sm:$0xff] %vm353, %v417
        $region44: #{tpu_custom_call.1} parent=31 // pred_fallthru
          _
        %s420 = smul.u32 2, %s21
        %p421 = scmp.lt.s32.totalorder %s420, 1
        %s422 = scalar_select %p421, %s420, 1
        %s423 = smul.addr %s422, 8
        %s424 = scalar_lea.vmem %s3, %s423
        // Predicated region
        $region45: #{tpu_custom_call.1} parent=31 // pred_check
          %p425 = pneg %p125
        $region46: #{tpu_custom_call.1} parent=31 // pred_check_branch
          %427 = sbr.rel (%p425) target = $region48
        $region47: #{tpu_custom_call.1} parent=31 // pred_region
          %s428 = smul.u32 2, %s21
        $region48: #{tpu_custom_call.1} parent=31 // pred_fallthru
          _
        // Predicated region
        $region49: #{tpu_custom_call.1} parent=31 // pred_check
          %p429 = pneg %p125
        $region50: #{tpu_custom_call.1} parent=31 // pred_check_branch
          %431 = sbr.rel (%p429) target = $region52
        $region51: #{tpu_custom_call.1} parent=31 // pred_region
          %s432 = smul.u32 2, %s21
          %p433 = scmp.lt.s32.totalorder %s432, 1
          %s434 = scalar_select %p433, %s432, 1
          %s435 = smul.addr %s434, 8
          %s436 = scalar_lea.vmem %s3, %s435
        $region52: #{tpu_custom_call.1} parent=31 // pred_fallthru
          _
      $region32: #{tpu_custom_call.1} parent=5 // pred_fallthru
        _
      %p437 = scmp.le.s32.totalorder 2, %s12
      // Predicated region
      $region53: #{tpu_custom_call.1} parent=5 // pred_check
        %p438 = pneg %p437
      $region54: #{tpu_custom_call.1} parent=5 // pred_check_branch
        %440 = sbr.rel (%p438) target = $region56
      $region55: #{tpu_custom_call.1} parent=5 // pred_region
        %s441 = ssub.s32 %s12, 2
      $region56: #{tpu_custom_call.1} parent=5 // pred_fallthru
        _
    $region6: #{tpu_custom_call.1} parent=1 // loop_footer
      %s16 = sadd.s32 1, %s12
    $region7: #{tpu_custom_call.1} parent=1 // loop_footer_branch
      %11 = sbr.rel target = $region3
    $region8: #{tpu_custom_call.1} parent=1 // loop_exit
      _
    %442 = vsyncpa [#allocation6], 1
    %s443 = scalar_lea.sflag [#allocation6], 1
    %444 = vsyncpa %s443, 1

</llo_original>
